<compile_context>
chip_gen: v5e
topology: v5e:2x2
jax: 0.10.0
libtpu: 0.0.40
codegen_flags: <defaults>
</compile_context>

<pallas_src>
import functools

import jax
import jax.numpy as jnp
from jax.experimental import pallas as pl
from jax.experimental.pallas import tpu as pltpu


def _round_up(x, m):
    return (x + m - 1) // m * m


def _attn_kernel(s_valid, q_ref, k_ref, v_ref, w_ref, b_ref,
                 out_ref, attn_ref, kproj_ref, vproj_ref):
    """One (batch, query-tile) grid step.

    q_ref:        (tq,  Din_p)   bf16  query tile
    k_ref, v_ref: (S_p, Din_p)   bf16  full (padded) key/value for this batch
    w_ref:        (Din_p, Dout_p) bf16 shared projection weight (pre-transposed)
    b_ref:        (1, Dout_p)    f32   shared projection bias
    out_ref:      (tq, Dout_p)   f32
    attn_ref:     (tq, S_p)      f32
    kproj/vproj:  (S_p, Dout_p)  bf16  scratch, persistent across query tiles
    """
    t = pl.program_id(1)

    # Project K and V once per batch element; reuse across all query tiles.
    @pl.when(t == 0)
    def _():
        w = w_ref[...]
        bias = b_ref[...]
        kp = jnp.dot(k_ref[...], w, preferred_element_type=jnp.float32) + bias
        vp = jnp.dot(v_ref[...], w, preferred_element_type=jnp.float32) + bias
        kproj_ref[...] = kp.astype(jnp.bfloat16)
        vproj_ref[...] = vp.astype(jnp.bfloat16)

    # Project this query tile (bf16 operands, f32 accumulation on the MXU).
    qp = (jnp.dot(q_ref[...], w_ref[...], preferred_element_type=jnp.float32)
          + b_ref[...])

    # Scores (tq, S_p): contract last dims directly (no in-kernel transpose).
    s = jax.lax.dot_general(
        qp.astype(jnp.bfloat16), kproj_ref[...],
        dimension_numbers=(((1,), (1,)), ((), ())),
        preferred_element_type=jnp.float32)

    # Mask padded key columns so they receive exactly zero attention weight.
    if s_valid < s.shape[-1]:
        col = jax.lax.broadcasted_iota(jnp.int32, s.shape, 1)
        s = jnp.where(col < s_valid, s, -jnp.inf)

    # Row softmax (unscaled, matching the PyTorch module with scaled=False).
    m = jnp.max(s, axis=-1, keepdims=True)
    e = jnp.exp(s - m)
    denom = jnp.sum(e, axis=-1, keepdims=True)
    attn = e * pl.reciprocal(denom, approx=True)

    out = jnp.dot(attn.astype(jnp.bfloat16), vproj_ref[...],
                  preferred_element_type=jnp.float32)

    out_ref[...] = out.astype(out_ref.dtype)
    attn_ref[...] = attn.astype(attn_ref.dtype)


def dot_product_attention(query, key, value, weight, bias, *, tq=None):
    """query/key/value: (B, T|S, Din) f32. weight: (Dout, Din). bias: (Dout,).

    Returns (output (B, T, Dout) f32, attn (B, T, S) f32).
    """
    B, T, Din = query.shape
    S = key.shape[1]
    Dout = weight.shape[0]

    # Tiling / padding: lane-dense last dims (multiples of 128), T tiled.
    if tq is None:
        tq = min(128, _round_up(T, 8))
    T_p = _round_up(T, tq)
    S_p = _round_up(S, 128)
    Din_p = _round_up(Din, 128)
    Dout_p = _round_up(Dout, 128)

    bf16 = jnp.bfloat16

    def pad_seq(x, seq_p):
        _, s, d = x.shape
        return jnp.pad(x, ((0, 0), (0, seq_p - s), (0, Din_p - d))).astype(bf16)

    q_p = pad_seq(query, T_p)
    k_p = pad_seq(key, S_p)
    v_p = pad_seq(value, S_p)

    # Pre-transpose shared weight to (Din, Dout); zero-padding means padded
    # input/output features contribute exactly zero.
    w_p = jnp.pad(weight.T, ((0, Din_p - Din), (0, Dout_p - Dout))).astype(bf16)
    b_p = jnp.pad(bias, (0, Dout_p - Dout)).reshape(1, Dout_p).astype(jnp.float32)

    grid = (B, T_p // tq)
    kernel = functools.partial(_attn_kernel, S)

    out_p, attn_p = pl.pallas_call(
        kernel,
        out_shape=(
            jax.ShapeDtypeStruct((B, T_p, Dout_p), jnp.float32),
            jax.ShapeDtypeStruct((B, T_p, S_p), jnp.float32),
        ),
        grid_spec=pltpu.PrefetchScalarGridSpec(
            num_scalar_prefetch=0,
            grid=grid,
            in_specs=[
                # query: one (tq, Din_p) tile per step
                pl.BlockSpec((pl.Squeezed(), tq, Din_p), lambda b, t: (b, t, 0)),
                # key/value: full padded sequence; index_map ignores t so the
                # block stays resident (no re-DMA) across query tiles.
                pl.BlockSpec((pl.Squeezed(), S_p, Din_p), lambda b, t: (b, 0, 0)),
                pl.BlockSpec((pl.Squeezed(), S_p, Din_p), lambda b, t: (b, 0, 0)),
                # shared projection weight / bias
                pl.BlockSpec((Din_p, Dout_p), lambda b, t: (0, 0)),
                pl.BlockSpec((1, Dout_p), lambda b, t: (0, 0)),
            ],
            out_specs=[
                pl.BlockSpec((pl.Squeezed(), tq, Dout_p), lambda b, t: (b, t, 0)),
                pl.BlockSpec((pl.Squeezed(), tq, S_p), lambda b, t: (b, t, 0)),
            ],
            scratch_shapes=[
                pltpu.VMEM((S_p, Dout_p), bf16),   # projected K (per batch)
                pltpu.VMEM((S_p, Dout_p), bf16),   # projected V (per batch)
            ],
        ),
        compiler_params=pltpu.CompilerParams(
            # Batch axis parallel (megacore on v7x); query-tile axis arbitrary
            # so the per-batch K/V projection hoist (pl.when(t == 0)) is sound.
            dimension_semantics=("parallel", "arbitrary"),
            vmem_limit_bytes=64 * 1024 * 1024,
        ),
    )(q_p, k_p, v_p, w_p, b_p)

    return out_p[:, :T, :Dout], attn_p[:, :T, :S]


def reference(query, key, value, weight, bias):
    """Pure-JAX reference using the same bf16-operand / f32-accumulate scheme."""
    bf16 = jnp.bfloat16
    w = weight.astype(bf16)

    def proj(x):
        return jnp.einsum("bsd,od->bso", x.astype(bf16), w,
                          preferred_element_type=jnp.float32) + bias

    q, k, v = proj(query), proj(key), proj(value)
    a = jnp.einsum("btd,bsd->bts", q.astype(bf16), k.astype(bf16),
                   preferred_element_type=jnp.float32)
    attn = jax.nn.softmax(a, axis=-1)
    out = jnp.einsum("bts,bsd->btd", attn.astype(bf16), v.astype(bf16),
                     preferred_element_type=jnp.float32)
    return out, attn


if __name__ == "__main__":
    key0 = jax.random.PRNGKey(0)
    kq, kk, kv, kw, kb = jax.random.split(key0, 5)

    B, T, S = 2, 8, 8
    qdim = 32
    output_dim = qdim  # default: output_dim = vdim = qdim

    query = jax.random.normal(kq, (B, T, qdim), dtype=jnp.float32)
    key_ = jax.random.normal(kk, (B, S, qdim), dtype=jnp.float32)
    value = jax.random.normal(kv, (B, S, qdim), dtype=jnp.float32)

    # "nn.Linear" parameters (torch shapes: W (out, in), b (out,))
    bound = 1.0 / jnp.sqrt(qdim)
    weight = jax.random.uniform(kw, (output_dim, qdim), minval=-bound,
                                maxval=bound, dtype=jnp.float32)
    bias = jax.random.uniform(kb, (output_dim,), minval=-bound, maxval=bound,
                              dtype=jnp.float32)

    out, attn = dot_product_attention(query, key_, value, weight, bias)
    out = jax.block_until_ready(out)
    attn = jax.block_until_ready(attn)

    out_ref, attn_ref = reference(query, key_, value, weight, bias)
    # bf16 MXU operands + approximate reciprocal -> modest tolerances.
    assert jnp.allclose(out, out_ref, atol=2e-2, rtol=2e-2), "output mismatch"
    assert jnp.allclose(attn, attn_ref, atol=2e-2, rtol=2e-2), "attn mismatch"
    assert out.shape == (B, T, output_dim) and attn.shape == (B, T, S)

    print("KERNEL_OK")
</pallas_src>

<mosaic_0001>
module attributes {stable_mosaic.version = 11 : i64} {
  func.func @_attn_kernel(%arg0: i32, %arg1: i32, %arg2: memref<1x8x128xbf16, #tpu.memory_space<vmem>>, %arg3: memref<1x128x128xbf16, #tpu.memory_space<vmem>>, %arg4: memref<1x128x128xbf16, #tpu.memory_space<vmem>>, %arg5: memref<128x128xbf16, #tpu.memory_space<vmem>>, %arg6: memref<1x128xf32, #tpu.memory_space<vmem>>, %arg7: memref<1x8x128xf32, #tpu.memory_space<vmem>>, %arg8: memref<1x8x128xf32, #tpu.memory_space<vmem>>, %arg9: memref<128x128xbf16, #tpu.memory_space<vmem>>, %arg10: memref<128x128xbf16, #tpu.memory_space<vmem>>) attributes {dimension_semantics = [#tpu.dimension_semantics<parallel>, #tpu.dimension_semantics<arbitrary>], iteration_bounds = array<i64: 2, 1>, scalar_prefetch = 0 : i64, scratch_operands = 2 : i64, tpu.core_type = #tpu.core_type<tc>, window_params = [{transform_indices = @transform_0, window_bounds = array<i64: 1, 8, 128>}, {transform_indices = @transform_1, window_bounds = array<i64: 1, 128, 128>}, {transform_indices = @transform_2, window_bounds = array<i64: 1, 128, 128>}, {pipeline_mode = #tpu.pipeline_mode<synchronous>, transform_indices = @transform_3, window_bounds = array<i64: 128, 128>}, {pipeline_mode = #tpu.pipeline_mode<synchronous>, transform_indices = @transform_4, window_bounds = array<i64: 1, 128>}, {transform_indices = @transform_5, window_bounds = array<i64: 1, 8, 128>}, {transform_indices = @transform_6, window_bounds = array<i64: 1, 8, 128>}]} {
    %c0_i32 = arith.constant 0 : i32
    %0 = arith.cmpi eq, %arg1, %c0_i32 : i32
    %1 = arith.extui %0 : i1 to i32
    %c0_i32_0 = arith.constant 0 : i32
    %2 = arith.cmpi ne, %1, %c0_i32_0 : i32
    scf.if %2 {
      %c0_22 = arith.constant 0 : index
      %c0_23 = arith.constant 0 : index
      %37 = vector.load %arg5[%c0_22, %c0_23] : memref<128x128xbf16, #tpu.memory_space<vmem>>, vector<128x128xbf16>
      %c0_24 = arith.constant 0 : index
      %c0_25 = arith.constant 0 : index
      %38 = vector.load %arg6[%c0_24, %c0_25] : memref<1x128xf32, #tpu.memory_space<vmem>>, vector<1x128xf32>
      %c0_26 = arith.constant 0 : index
      %c0_27 = arith.constant 0 : index
      %c0_28 = arith.constant 0 : index
      %39 = vector.load %arg3[%c0_26, %c0_27, %c0_28] : memref<1x128x128xbf16, #tpu.memory_space<vmem>>, vector<1x128x128xbf16>
      %40 = vector.shape_cast %39 : vector<1x128x128xbf16> to vector<128x128xbf16>
      %cst_29 = arith.constant dense<0.000000e+00> : vector<128x128xf32>
      %41 = tpu.matmul %40, %37, %cst_29 {dimension_numbers = #tpu.dot_dimension_numbers<[1], [0], [0], [1], [0, 0, 1, 1], [], []>} : vector<128x128xbf16>, vector<128x128xbf16>, vector<128x128xf32> -> vector<128x128xf32>
      %42 = vector.broadcast %38 : vector<1x128xf32> to vector<128x128xf32>
      %43 = arith.addf %41, %42 : vector<128x128xf32>
      %c0_30 = arith.constant 0 : index
      %c0_31 = arith.constant 0 : index
      %c0_32 = arith.constant 0 : index
      %44 = vector.load %arg4[%c0_30, %c0_31, %c0_32] : memref<1x128x128xbf16, #tpu.memory_space<vmem>>, vector<1x128x128xbf16>
      %45 = vector.shape_cast %44 : vector<1x128x128xbf16> to vector<128x128xbf16>
      %cst_33 = arith.constant dense<0.000000e+00> : vector<128x128xf32>
      %46 = tpu.matmul %45, %37, %cst_33 {dimension_numbers = #tpu.dot_dimension_numbers<[1], [0], [0], [1], [0, 0, 1, 1], [], []>} : vector<128x128xbf16>, vector<128x128xbf16>, vector<128x128xf32> -> vector<128x128xf32>
      %47 = vector.broadcast %38 : vector<1x128xf32> to vector<128x128xf32>
      %48 = arith.addf %46, %47 : vector<128x128xf32>
      %49 = arith.truncf %43 : vector<128x128xf32> to vector<128x128xbf16>
      %c0_34 = arith.constant 0 : index
      %c0_35 = arith.constant 0 : index
      %50 = vector.load %arg9[%c0_34, %c0_35] : memref<128x128xbf16, #tpu.memory_space<vmem>>, vector<128x128xbf16>
      tpu.vector_store %arg9[%c0_34, %c0_35], %49 {strides = array<i32>} : memref<128x128xbf16, #tpu.memory_space<vmem>>, vector<128x128xbf16>,
      %51 = arith.truncf %48 : vector<128x128xf32> to vector<128x128xbf16>
      %c0_36 = arith.constant 0 : index
      %c0_37 = arith.constant 0 : index
      %52 = vector.load %arg10[%c0_36, %c0_37] : memref<128x128xbf16, #tpu.memory_space<vmem>>, vector<128x128xbf16>
      tpu.vector_store %arg10[%c0_36, %c0_37], %51 {strides = array<i32>} : memref<128x128xbf16, #tpu.memory_space<vmem>>, vector<128x128xbf16>,
    } else {
    }
    %c0 = arith.constant 0 : index
    %c0_1 = arith.constant 0 : index
    %c0_2 = arith.constant 0 : index
    %3 = vector.load %arg2[%c0, %c0_1, %c0_2] : memref<1x8x128xbf16, #tpu.memory_space<vmem>>, vector<1x8x128xbf16>
    %4 = vector.shape_cast %3 : vector<1x8x128xbf16> to vector<8x128xbf16>
    %c0_3 = arith.constant 0 : index
    %c0_4 = arith.constant 0 : index
    %5 = vector.load %arg5[%c0_3, %c0_4] : memref<128x128xbf16, #tpu.memory_space<vmem>>, vector<128x128xbf16>
    %cst = arith.constant dense<0.000000e+00> : vector<8x128xf32>
    %6 = tpu.matmul %4, %5, %cst {dimension_numbers = #tpu.dot_dimension_numbers<[1], [0], [0], [1], [0, 0, 1, 1], [], []>} : vector<8x128xbf16>, vector<128x128xbf16>, vector<8x128xf32> -> vector<8x128xf32>
    %c0_5 = arith.constant 0 : index
    %c0_6 = arith.constant 0 : index
    %7 = vector.load %arg6[%c0_5, %c0_6] : memref<1x128xf32, #tpu.memory_space<vmem>>, vector<1x128xf32>
    %8 = vector.broadcast %7 : vector<1x128xf32> to vector<8x128xf32>
    %9 = arith.addf %6, %8 : vector<8x128xf32>
    %10 = arith.truncf %9 : vector<8x128xf32> to vector<8x128xbf16>
    %c0_7 = arith.constant 0 : index
    %c0_8 = arith.constant 0 : index
    %11 = vector.load %arg9[%c0_7, %c0_8] : memref<128x128xbf16, #tpu.memory_space<vmem>>, vector<128x128xbf16>
    %cst_9 = arith.constant dense<0.000000e+00> : vector<8x128xf32>
    %12 = tpu.matmul %10, %11, %cst_9 {dimension_numbers = #tpu.dot_dimension_numbers<[1], [1], [0], [0], [0, 0, 1, 0], [], []>} : vector<8x128xbf16>, vector<128x128xbf16>, vector<8x128xf32> -> vector<8x128xf32>
    %13 = tpu.iota {dimensions = array<i32: 1>} : vector<8x128xi32>
    %c8_i32 = arith.constant 8 : i32
    %14 = vector.broadcast %c8_i32 : i32 to vector<8x128xi32>
    %15 = arith.cmpi slt, %13, %14 : vector<8x128xi32>
    %cst_10 = arith.constant 0xFF800000 : f32
    %16 = vector.broadcast %cst_10 : f32 to vector<8x128xf32>
    %17 = arith.select %15, %12, %16 : vector<8x128xi1>, vector<8x128xf32>
    %cst_11 = arith.constant dense<0xFF800000> : vector<8xf32>
    %18 = vector.multi_reduction <maximumf>, %17, %cst_11 [1] : vector<8x128xf32> to vector<8xf32>
    %19 = vector.shape_cast %18 : vector<8xf32> to vector<8x1xf32>
    %20 = vector.broadcast %19 : vector<8x1xf32> to vector<8x128xf32>
    %21 = arith.subf %17, %20 : vector<8x128xf32>
    %22 = math.exp %21 : vector<8x128xf32>
    %cst_12 = arith.constant dense<0.000000e+00> : vector<8xf32>
    %23 = vector.multi_reduction <add>, %22, %cst_12 [1] : vector<8x128xf32> to vector<8xf32>
    %24 = vector.shape_cast %23 : vector<8xf32> to vector<8x1xf32>
    %25 = tpu.reciprocal %24 {approx = true} : vector<8x1xf32> -> vector<8x1xf32>
    %26 = vector.broadcast %25 : vector<8x1xf32> to vector<8x128xf32>
    %27 = arith.mulf %22, %26 : vector<8x128xf32>
    %28 = arith.truncf %27 : vector<8x128xf32> to vector<8x128xbf16>
    %c0_13 = arith.constant 0 : index
    %c0_14 = arith.constant 0 : index
    %29 = vector.load %arg10[%c0_13, %c0_14] : memref<128x128xbf16, #tpu.memory_space<vmem>>, vector<128x128xbf16>
    %cst_15 = arith.constant dense<0.000000e+00> : vector<8x128xf32>
    %30 = tpu.matmul %28, %29, %cst_15 {dimension_numbers = #tpu.dot_dimension_numbers<[1], [0], [0], [1], [0, 0, 1, 1], [], []>} : vector<8x128xbf16>, vector<128x128xbf16>, vector<8x128xf32> -> vector<8x128xf32>
    %c0_16 = arith.constant 0 : index
    %c0_17 = arith.constant 0 : index
    %c0_18 = arith.constant 0 : index
    %31 = vector.load %arg7[%c0_16, %c0_17, %c0_18] : memref<1x8x128xf32, #tpu.memory_space<vmem>>, vector<1x8x128xf32>
    %32 = vector.shape_cast %31 : vector<1x8x128xf32> to vector<8x128xf32>
    %33 = vector.shape_cast %30 : vector<8x128xf32> to vector<1x8x128xf32>
    tpu.vector_store %arg7[%c0_16, %c0_17, %c0_18], %33 {strides = array<i32>} : memref<1x8x128xf32, #tpu.memory_space<vmem>>, vector<1x8x128xf32>,
    %c0_19 = arith.constant 0 : index
    %c0_20 = arith.constant 0 : index
    %c0_21 = arith.constant 0 : index
    %34 = vector.load %arg8[%c0_19, %c0_20, %c0_21] : memref<1x8x128xf32, #tpu.memory_space<vmem>>, vector<1x8x128xf32>
    %35 = vector.shape_cast %34 : vector<1x8x128xf32> to vector<8x128xf32>
    %36 = vector.shape_cast %27 : vector<8x128xf32> to vector<1x8x128xf32>
    tpu.vector_store %arg8[%c0_19, %c0_20, %c0_21], %36 {strides = array<i32>} : memref<1x8x128xf32, #tpu.memory_space<vmem>>, vector<1x8x128xf32>,
    return
  }
  func.func @transform_0(%arg0: i32, %arg1: i32) -> (i32, i32, i32) {
    %c0_i32 = arith.constant 0 : i32
    %c0_i32_0 = arith.constant 0 : i32
    return %arg0, %arg1, %c0_i32 : i32, i32, i32
  }
  func.func @transform_1(%arg0: i32, %arg1: i32) -> (i32, i32, i32) {
    %c0_i32 = arith.constant 0 : i32
    %c0_i32_0 = arith.constant 0 : i32
    %c0_i32_1 = arith.constant 0 : i32
    return %arg0, %c0_i32, %c0_i32_0 : i32, i32, i32
  }
  func.func @transform_2(%arg0: i32, %arg1: i32) -> (i32, i32, i32) {
    %c0_i32 = arith.constant 0 : i32
    %c0_i32_0 = arith.constant 0 : i32
    %c0_i32_1 = arith.constant 0 : i32
    return %arg0, %c0_i32, %c0_i32_0 : i32, i32, i32
  }
  func.func @transform_3(%arg0: i32, %arg1: i32) -> (i32, i32) {
    %c0_i32 = arith.constant 0 : i32
    %c0_i32_0 = arith.constant 0 : i32
    %c0_i32_1 = arith.constant 0 : i32
    return %c0_i32, %c0_i32_0 : i32, i32
  }
  func.func @transform_4(%arg0: i32, %arg1: i32) -> (i32, i32) {
    %c0_i32 = arith.constant 0 : i32
    %c0_i32_0 = arith.constant 0 : i32
    %c0_i32_1 = arith.constant 0 : i32
    return %c0_i32, %c0_i32_0 : i32, i32
  }
  func.func @transform_5(%arg0: i32, %arg1: i32) -> (i32, i32, i32) {
    %c0_i32 = arith.constant 0 : i32
    %c0_i32_0 = arith.constant 0 : i32
    return %arg0, %arg1, %c0_i32 : i32, i32, i32
  }
  func.func @transform_6(%arg0: i32, %arg1: i32) -> (i32, i32, i32) {
    %c0_i32 = arith.constant 0 : i32
    %c0_i32_0 = arith.constant 0 : i32
    return %arg0, %arg1, %c0_i32 : i32, i32, i32
  }
}

</mosaic_0001>

<llo_original>
// kernel: tpu_custom_call.1
$region0: #{tpu_custom_call.1}
  #allocation0 [shape = 'u32[]', space=smem, size = 0x4, offset = 0x4, fixed_abs, tag = 'smem constant byte address 0x4 - core index']
  #allocation1 [shape = 'u32[72,128]{1,0:T(1,128)}', space=vmem, size = 0x9000, scoped, tag = 'internal scratch']
  #allocation2 [shape = 'bf16[128,128]{1,0:T(8,128)(2,1)}', space=vmem, size = 0x8000, scoped, tag = 'scratch operand']
  #allocation3 [shape = 'bf16[128,128]{1,0:T(8,128)(2,1)}', space=vmem, size = 0x8000, scoped, tag = 'scratch operand']
  %s0 = inlined_call_operand.hbm [shape: bf16[2,8,128], index: 0, kind: input, shape index: {}]
  %s1 = inlined_call_operand.hbm [shape: bf16[2,128,128], index: 1, kind: input, shape index: {}]
  %s2 = inlined_call_operand.hbm [shape: bf16[2,128,128], index: 2, kind: input, shape index: {}]
  %s3 = inlined_call_operand.hbm [shape: bf16[128,128], index: 3, kind: input, shape index: {}]
  %s4 = inlined_call_operand.vmem [shape: f32[1,128], index: 4, kind: input, shape index: {}]
  %s5 = inlined_call_operand.hbm [shape: f32[2,8,128], index: 5, kind: output, shape index: {0}]
  %s6 = inlined_call_operand.hbm [shape: f32[2,8,128], index: 6, kind: output, shape index: {1}]
  %7 = xla_tuple %s5, %s6
  %s8 = sld [smem:[#allocation0]]
  $region81: #{tpu_custom_call.1} parent=0
    _
  %s10 = ssub.s32 1, %s8
  %s11 = scalar_select 0, %s10, %s8
  $region1: #{tpu_custom_call.1} parent=0
    #allocation4 [shape = 'u8[4096]{0}', space=vmem, size = 0x1000, scoped, tag = 'input window, operand 0']
    #allocation5 [shape = 's32[2]{0}', space=sflag, size = 0x8, scoped, tag = 'scoped memory for tpu_custom_call.1']
    #allocation6 [shape = 's32[2]{0}', space=sflag, size = 0x8, scoped, tag = 'scoped memory for tpu_custom_call.1']
    #allocation7 [shape = 'u8[65536]{0}', space=vmem, size = 0x10000, scoped, tag = 'input window, operand 1']
    #allocation8 [shape = 's32[2]{0}', space=sflag, size = 0x8, scoped, tag = 'scoped memory for tpu_custom_call.1']
    #allocation9 [shape = 'u8[65536]{0}', space=vmem, size = 0x10000, scoped, tag = 'input window, operand 2']
    #allocation10 [shape = 'u8[32768]{0}', space=vmem, size = 0x8000, scoped, tag = 'input window, operand 3, single buffered']
    #allocation11 [shape = 's32[1]{0}', space=sflag, size = 0x4, scoped, tag = 'scoped memory for tpu_custom_call.1']
    #allocation12 [shape = 'u8[8192]{0}', space=vmem, size = 0x2000, scoped, tag = 'output window, operand 0']
    #allocation13 [shape = 'u8[8192]{0}', space=vmem, size = 0x2000, scoped, tag = 'output window, operand 1']
    #allocation14 [shape = 's32[2]{0}', space=sflag, size = 0x8, scoped, tag = 'scoped memory for tpu_custom_call.1']
    %12 = vsyncpa [#allocation5], 0
    %s13 = scalar_lea.sflag [#allocation5], 1
    %14 = vsyncpa %s13, 0
    %15 = vsyncpa [#allocation8], 0
    %s16 = scalar_lea.sflag [#allocation8], 1
    %17 = vsyncpa %s16, 0
    %18 = vsyncpa [#allocation11], 0
    %19 = vsyncpa [#allocation6], 0
    %s20 = scalar_lea.sflag [#allocation6], 1
    %21 = vsyncpa %s20, 0
    %22 = vsyncpa [#allocation14], 0
    %s23 = scalar_lea.sflag [#allocation14], 1
    %24 = vsyncpa %s23, 0
    loop: start=0, step=1, limit=4
    $region2: #{tpu_custom_call.1} parent=1 // loop_pre_header
      _
    $region3: #{tpu_custom_call.1} parent=1 // loop_header
      %s26 = sphi 0, %s30
      %p27 = scmp.ge.s32.totalorder %s26, 4
      %s33 = sphi 0, %s45
      %s34 = sphi 0, %s41
      %s35 = sphi 0, %s33
      %s36 = sphi 0, %s34
      %s37 = sphi 0, %s35
      %s38 = sphi 0, %s36
      %s50 = sphi 0, %s52
      %s53 = sphi 0, %s50
      %s54 = sphi 0, %s53
      %s70 = sphi 0, %s54
      %s76 = sphi 0, %s78
      %s79 = sphi 0, %s76
      %s80 = sphi 0, %s79
      %s96 = sphi 0, %s80
      %s102 = sphi 0, %s104
      %s105 = sphi 0, %s102
      %s106 = sphi 0, %s105
      %s122 = sphi 0, %s106
      %s126 = sphi 0, %s126
      %s128 = sphi 0, %s126
      %s129 = sphi 0, %s128
      %s143 = sphi 0, %s129
      %s147 = sphi 0, %s147
      %s149 = sphi 0, %s147
      %s150 = sphi 0, %s149
      %s164 = sphi 0, %s150
      %s172 = sphi 0, %s174
      %s175 = sphi 0, %s172
      %s176 = sphi 0, %s175
      %s192 = sphi 0, %s176
      %s200 = sphi 0, %s202
      %s203 = sphi 0, %s200
      %s204 = sphi 0, %s203
      %s220 = sphi 0, %s204
    $region4: #{tpu_custom_call.1} parent=1 // loop_header_branch
      %29 = sbr.rel (%p27) target = $region8
    $region5: #{tpu_custom_call.1} parent=1 // loop_body
      %s31 = ssub.s32 %s26, 1
      %s32 = ssub.s32 %s26, 2
      %s39 = sadd.s32 1, %s34
      %p40 = scmp.ge.s32.totalorder %s39, 1
      %s41 = scalar_select %p40, 0, %s39
      %s42 = sadd.s32 1, %s33
      %s43 = scalar_select %p40, %s42, %s33
      %p44 = scmp.ge.s32.totalorder %s43, 2
      %s45 = scalar_select %p44, 0, %s43
      %s46 = ssub.s32 %s33, %s45
      %s47 = ssub.s32 %s34, %s41
      %s48 = sor.u32 %s46, %s47
      %p49 = scmp.eq.s32.totalorder %s48, 0
      %s51 = sadd.s32 %s50, 1
      %s52 = scalar_select %p49, %s50, %s51
      %p55 = pneg %p49
      %p56 = scmp.eq.s32.totalorder %s26, 1
      %p57 = por %p55, %p56
      %p58 = scmp.ne.s32.totalorder %s50, %s53
      %p59 = scmp.eq.s32.totalorder %s26, 0
      %p60 = por %p58, %p59
      %p61 = scmp.ne.s32.totalorder %s50, %s53
      %p62 = scmp.eq.s32.totalorder %s31, 1
      %p63 = por %p61, %p62
      %p64 = scmp.ne.s32.totalorder %s53, %s54
      %p65 = scmp.eq.s32.totalorder %s31, 0
      %p66 = por %p64, %p65
      %p67 = scmp.ne.s32.totalorder %s53, %s54
      %p68 = scmp.eq.s32.totalorder %s32, 1
      %p69 = por %p67, %p68
      %p71 = scmp.ne.s32.totalorder %s54, %s70
      %p72 = scmp.eq.s32.totalorder %s32, 0
      %p73 = por %p71, %p72
      %s74 = ssub.s32 %s33, %s45
      %p75 = scmp.eq.s32.totalorder %s74, 0
      %s77 = sadd.s32 %s76, 1
      %s78 = scalar_select %p75, %s76, %s77
      %p81 = pneg %p75
      %p82 = scmp.eq.s32.totalorder %s26, 1
      %p83 = por %p81, %p82
      %p84 = scmp.ne.s32.totalorder %s76, %s79
      %p85 = scmp.eq.s32.totalorder %s26, 0
      %p86 = por %p84, %p85
      %p87 = scmp.ne.s32.totalorder %s76, %s79
      %p88 = scmp.eq.s32.totalorder %s31, 1
      %p89 = por %p87, %p88
      %p90 = scmp.ne.s32.totalorder %s79, %s80
      %p91 = scmp.eq.s32.totalorder %s31, 0
      %p92 = por %p90, %p91
      %p93 = scmp.ne.s32.totalorder %s79, %s80
      %p94 = scmp.eq.s32.totalorder %s32, 1
      %p95 = por %p93, %p94
      %p97 = scmp.ne.s32.totalorder %s80, %s96
      %p98 = scmp.eq.s32.totalorder %s32, 0
      %p99 = por %p97, %p98
      %s100 = ssub.s32 %s33, %s45
      %p101 = scmp.eq.s32.totalorder %s100, 0
      %s103 = sadd.s32 %s102, 1
      %s104 = scalar_select %p101, %s102, %s103
      %p107 = pneg %p101
      %p108 = scmp.eq.s32.totalorder %s26, 1
      %p109 = por %p107, %p108
      %p110 = scmp.ne.s32.totalorder %s102, %s105
      %p111 = scmp.eq.s32.totalorder %s26, 0
      %p112 = por %p110, %p111
      %p113 = scmp.ne.s32.totalorder %s102, %s105
      %p114 = scmp.eq.s32.totalorder %s31, 1
      %p115 = por %p113, %p114
      %p116 = scmp.ne.s32.totalorder %s105, %s106
      %p117 = scmp.eq.s32.totalorder %s31, 0
      %p118 = por %p116, %p117
      %p119 = scmp.ne.s32.totalorder %s105, %s106
      %p120 = scmp.eq.s32.totalorder %s32, 1
      %p121 = por %p119, %p120
      %p123 = scmp.ne.s32.totalorder %s106, %s122
      %p124 = scmp.eq.s32.totalorder %s32, 0
      %p125 = por %p123, %p124
      %s127 = sadd.s32 %s126, 1
      %p130 = scmp.eq.s32.totalorder %s26, 1
      %p131 = scmp.ne.s32.totalorder %s126, %s128
      %p132 = scmp.eq.s32.totalorder %s26, 0
      %p133 = por %p131, %p132
      %p134 = scmp.ne.s32.totalorder %s126, %s128
      %p135 = scmp.eq.s32.totalorder %s31, 1
      %p136 = por %p134, %p135
      %p137 = scmp.ne.s32.totalorder %s128, %s129
      %p138 = scmp.eq.s32.totalorder %s31, 0
      %p139 = por %p137, %p138
      %p140 = scmp.ne.s32.totalorder %s128, %s129
      %p141 = scmp.eq.s32.totalorder %s32, 1
      %p142 = por %p140, %p141
      %p144 = scmp.ne.s32.totalorder %s129, %s143
      %p145 = scmp.eq.s32.totalorder %s32, 0
      %p146 = por %p144, %p145
      %s148 = sadd.s32 %s147, 1
      %p151 = scmp.eq.s32.totalorder %s26, 1
      %p152 = scmp.ne.s32.totalorder %s147, %s149
      %p153 = scmp.eq.s32.totalorder %s26, 0
      %p154 = por %p152, %p153
      %p155 = scmp.ne.s32.totalorder %s147, %s149
      %p156 = scmp.eq.s32.totalorder %s31, 1
      %p157 = por %p155, %p156
      %p158 = scmp.ne.s32.totalorder %s149, %s150
      %p159 = scmp.eq.s32.totalorder %s31, 0
      %p160 = por %p158, %p159
      %p161 = scmp.ne.s32.totalorder %s149, %s150
      %p162 = scmp.eq.s32.totalorder %s32, 1
      %p163 = por %p161, %p162
      %p165 = scmp.ne.s32.totalorder %s150, %s164
      %p166 = scmp.eq.s32.totalorder %s32, 0
      %p167 = por %p165, %p166
      %s168 = ssub.s32 %s33, %s45
      %s169 = ssub.s32 %s34, %s41
      %s170 = sor.u32 %s168, %s169
      %p171 = scmp.eq.s32.totalorder %s170, 0
      %s173 = sadd.s32 %s172, 1
      %s174 = scalar_select %p171, %s172, %s173
      %p177 = pneg %p171
      %p178 = scmp.eq.s32.totalorder %s26, 1
      %p179 = por %p177, %p178
      %p180 = scmp.ne.s32.totalorder %s172, %s175
      %p181 = scmp.eq.s32.totalorder %s26, 0
      %p182 = por %p180, %p181
      %p183 = scmp.ne.s32.totalorder %s172, %s175
      %p184 = scmp.eq.s32.totalorder %s31, 1
      %p185 = por %p183, %p184
      %p186 = scmp.ne.s32.totalorder %s175, %s176
      %p187 = scmp.eq.s32.totalorder %s31, 0
      %p188 = por %p186, %p187
      %p189 = scmp.ne.s32.totalorder %s175, %s176
      %p190 = scmp.eq.s32.totalorder %s32, 1
      %p191 = por %p189, %p190
      %p193 = scmp.ne.s32.totalorder %s176, %s192
      %p194 = scmp.eq.s32.totalorder %s32, 0
      %p195 = por %p193, %p194
      %s196 = ssub.s32 %s33, %s45
      %s197 = ssub.s32 %s34, %s41
      %s198 = sor.u32 %s196, %s197
      %p199 = scmp.eq.s32.totalorder %s198, 0
      %s201 = sadd.s32 %s200, 1
      %s202 = scalar_select %p199, %s200, %s201
      %p205 = pneg %p199
      %p206 = scmp.eq.s32.totalorder %s26, 1
      %p207 = por %p205, %p206
      %p208 = scmp.ne.s32.totalorder %s200, %s203
      %p209 = scmp.eq.s32.totalorder %s26, 0
      %p210 = por %p208, %p209
      %p211 = scmp.ne.s32.totalorder %s200, %s203
      %p212 = scmp.eq.s32.totalorder %s31, 1
      %p213 = por %p211, %p212
      %p214 = scmp.ne.s32.totalorder %s203, %s204
      %p215 = scmp.eq.s32.totalorder %s31, 0
      %p216 = por %p214, %p215
      %p217 = scmp.ne.s32.totalorder %s203, %s204
      %p218 = scmp.eq.s32.totalorder %s32, 1
      %p219 = por %p217, %p218
      %p221 = scmp.ne.s32.totalorder %s204, %s220
      %p222 = scmp.eq.s32.totalorder %s32, 0
      %p223 = por %p221, %p222
      %p224 = scmp.le.s32.totalorder 1, %s26
      %p225 = scmp.lt.s32.totalorder %s26, 3
      %p226 = pnand %p224, %p225
      %p227 = pneg %p226
      // Predicated region
      $region9: #{tpu_custom_call.1} parent=5 // pred_check
        _
      $region10: #{tpu_custom_call.1} parent=5 // pred_check_branch
        %229 = sbr.rel (%p226) target = $region12
      $region11: #{tpu_custom_call.1} parent=5 // pred_region
        %s230 = ssub.s32 %s26, 1
        // Predicated region
        $region13: #{tpu_custom_call.1} parent=11 // pred_check
          %p231 = pneg %p139
        $region14: #{tpu_custom_call.1} parent=11 // pred_check_branch
          %233 = sbr.rel (%p231) target = $region16
        $region15: #{tpu_custom_call.1} parent=11 // pred_region
          %235 = vsyncadd [#allocation11], 0
          %s236 = sshll.u32 %s3, 4
          %s237 = int_to_ptr.hbm [resolvable:$true] %s236
          %s238 = sshll.u32 [#allocation10], 4
          %s239 = int_to_ptr.vmem [resolvable:$true] %s238
          %244 = dma.hbm_to_vmem [thread:$0]  %s237, 1024, %s239, [#allocation11], 64, 64, 4
        $region16: #{tpu_custom_call.1} parent=11 // pred_fallthru
          _
        // Predicated region
        $region17: #{tpu_custom_call.1} parent=11 // pred_check
          %p245 = pneg %p160
        $region18: #{tpu_custom_call.1} parent=11 // pred_check_branch
          %247 = sbr.rel (%p245) target = $region20
        $region19: #{tpu_custom_call.1} parent=11 // pred_region
          _
        $region20: #{tpu_custom_call.1} parent=11 // pred_fallthru
          _
      $region12: #{tpu_custom_call.1} parent=5 // pred_fallthru
        _
      %p248 = scmp.lt.s32.totalorder %s26, 2
      // Predicated region
      $region21: #{tpu_custom_call.1} parent=5 // pred_check
        %p249 = pneg %p248
      $region22: #{tpu_custom_call.1} parent=5 // pred_check_branch
        %251 = sbr.rel (%p249) target = $region24
      $region23: #{tpu_custom_call.1} parent=5 // pred_region
        // Predicated region
        $region25: #{tpu_custom_call.1} parent=23 // pred_check
          %p252 = pneg %p60
        $region26: #{tpu_custom_call.1} parent=23 // pred_check_branch
          %254 = sbr.rel (%p252) target = $region28
        $region27: #{tpu_custom_call.1} parent=23 // pred_region
          %s255 = sand.u32 %s50, 1
          %s256 = scalar_lea.sflag [#allocation5], %s255
          %s257 = sand.u32 %s50, 1
          %s258 = smul.addr %s257, 4
          %s259 = scalar_lea.vmem [#allocation4], %s258
          %261 = vsyncadd %s256, 0
          %s262 = sadd.s32 %s34, %s33
          %s263 = smul.addr %s262, 4
          %s264 = scalar_lea.hbm %s0, %s263
          %s266 = sshll.u32 %s264, 4
          %s267 = int_to_ptr.hbm [resolvable:$true] %s266
          %s268 = sshll.u32 %s259, 4
          %s269 = int_to_ptr.vmem [resolvable:$true] %s268
          %271 = dma.hbm_to_vmem [thread:$0]  %s267, 64, %s269, %s256
        $region28: #{tpu_custom_call.1} parent=23 // pred_fallthru
          _
        // Predicated region
        $region29: #{tpu_custom_call.1} parent=23 // pred_check
          %p272 = pneg %p86
        $region30: #{tpu_custom_call.1} parent=23 // pred_check_branch
          %274 = sbr.rel (%p272) target = $region32
        $region31: #{tpu_custom_call.1} parent=23 // pred_region
          %s275 = sand.u32 %s26, 1
          %s276 = scalar_lea.sflag [#allocation8], %s275
          %s277 = sand.u32 %s76, 1
          %s278 = smul.addr %s277, 64
          %s279 = scalar_lea.vmem [#allocation7], %s278
          %281 = vsyncadd %s276, 0
          %s282 = smul.addr %s33, 16
          %s283 = smul.addr %s282, 4
          %s284 = scalar_lea.hbm %s1, %s283
          %s285 = sshll.u32 %s284, 4
          %s286 = int_to_ptr.hbm [resolvable:$true] %s285
          %s287 = sshll.u32 %s279, 4
          %s288 = int_to_ptr.vmem [resolvable:$true] %s287
          %293 = dma.hbm_to_vmem [thread:$0]  %s286, 1024, %s288, %s276, 64, 64, 4
        $region32: #{tpu_custom_call.1} parent=23 // pred_fallthru
          _
        // Predicated region
        $region33: #{tpu_custom_call.1} parent=23 // pred_check
          %p294 = pneg %p112
        $region34: #{tpu_custom_call.1} parent=23 // pred_check_branch
          %296 = sbr.rel (%p294) target = $region36
        $region35: #{tpu_custom_call.1} parent=23 // pred_region
          %s297 = sand.u32 %s26, 1
          %s298 = scalar_lea.sflag [#allocation8], %s297
          %s299 = sand.u32 %s102, 1
          %s300 = smul.addr %s299, 64
          %s301 = scalar_lea.vmem [#allocation9], %s300
          %303 = vsyncadd %s298, 0
          %s304 = smul.addr %s33, 16
          %s305 = smul.addr %s304, 4
          %s306 = scalar_lea.hbm %s2, %s305
          %s307 = sshll.u32 %s306, 4
          %s308 = int_to_ptr.hbm [resolvable:$true] %s307
          %s309 = sshll.u32 %s301, 4
          %s310 = int_to_ptr.vmem [resolvable:$true] %s309
          %315 = dma.hbm_to_vmem [thread:$0]  %s308, 1024, %s310, %s298, 64, 64, 4
        $region36: #{tpu_custom_call.1} parent=23 // pred_fallthru
          _
      $region24: #{tpu_custom_call.1} parent=5 // pred_fallthru
        _
      %p316 = scmp.le.s32.totalorder 1, %s26
      %p317 = scmp.lt.s32.totalorder %s26, 3
      %p318 = pnand %p316, %p317
      %p319 = pneg %p318
      // Predicated region
      $region37: #{tpu_custom_call.1} parent=5 // pred_check
        _
      $region38: #{tpu_custom_call.1} parent=5 // pred_check_branch
        %321 = sbr.rel (%p318) target = $region40
      $region39: #{tpu_custom_call.1} parent=5 // pred_region
        %s322 = ssub.s32 %s26, 1
        %s323 = sand.u32 %s53, 1
        %s324 = scalar_lea.sflag [#allocation5], %s323
        %s325 = sand.u32 %s53, 1
        %s326 = smul.addr %s325, 4
        %s327 = scalar_lea.vmem [#allocation4], %s326
        // Predicated region
        $region41: #{tpu_custom_call.1} parent=39 // pred_check
          %p328 = pneg %p66
        $region42: #{tpu_custom_call.1} parent=39 // pred_check_branch
          %330 = sbr.rel (%p328) target = $region44
        $region43: #{tpu_custom_call.1} parent=39 // pred_region
          %332 = dma.done %s324, 64
        $region44: #{tpu_custom_call.1} parent=39 // pred_fallthru
          _
        %s333 = sand.u32 %s31, 1
        %s334 = scalar_lea.sflag [#allocation8], %s333
        %s335 = sand.u32 %s79, 1
        %s336 = smul.addr %s335, 64
        %s337 = scalar_lea.vmem [#allocation7], %s336
        // Predicated region
        $region45: #{tpu_custom_call.1} parent=39 // pred_check
          %p338 = pneg %p92
        $region46: #{tpu_custom_call.1} parent=39 // pred_check_branch
          %340 = sbr.rel (%p338) target = $region48
        $region47: #{tpu_custom_call.1} parent=39 // pred_region
          %342 = dma.done %s334, 1024
        $region48: #{tpu_custom_call.1} parent=39 // pred_fallthru
          _
        %s343 = sand.u32 %s31, 1
        %s344 = scalar_lea.sflag [#allocation8], %s343
        %s345 = sand.u32 %s105, 1
        %s346 = smul.addr %s345, 64
        %s347 = scalar_lea.vmem [#allocation9], %s346
        // Predicated region
        $region49: #{tpu_custom_call.1} parent=39 // pred_check
          %p348 = pneg %p118
        $region50: #{tpu_custom_call.1} parent=39 // pred_check_branch
          %350 = sbr.rel (%p348) target = $region52
        $region51: #{tpu_custom_call.1} parent=39 // pred_region
          %352 = dma.done %s344, 1024
        $region52: #{tpu_custom_call.1} parent=39 // pred_fallthru
          _
        // Predicated region
        $region53: #{tpu_custom_call.1} parent=39 // pred_check
          %p353 = pneg %p139
        $region54: #{tpu_custom_call.1} parent=39 // pred_check_branch
          %355 = sbr.rel (%p353) target = $region56
        $region55: #{tpu_custom_call.1} parent=39 // pred_region
          %357 = dma.done [#allocation11], 1024
        $region56: #{tpu_custom_call.1} parent=39 // pred_fallthru
          _
        %s358 = sand.u32 %s53, 1
        %s359 = scalar_lea.sflag [#allocation5], %s358
        %s360 = sand.u32 %s53, 1
        %s361 = smul.addr %s360, 4
        %s362 = scalar_lea.vmem [#allocation4], %s361
        %p363 = pneg %p66
        %p364 = pneg %p63
        %s365 = sand.u32 %s31, 1
        %s366 = scalar_lea.sflag [#allocation8], %s365
        %s367 = sand.u32 %s79, 1
        %s368 = smul.addr %s367, 64
        %s369 = scalar_lea.vmem [#allocation7], %s368
        %p370 = pneg %p92
        %p371 = pneg %p89
        %s372 = sand.u32 %s31, 1
        %s373 = scalar_lea.sflag [#allocation8], %s372
        %s374 = sand.u32 %s105, 1
        %s375 = smul.addr %s374, 64
        %s376 = scalar_lea.vmem [#allocation9], %s375
        %p377 = pneg %p118
        %p378 = pneg %p115
        %p379 = pneg %p139
        %p380 = pneg %p136
        %p381 = pneg %p160
        %p382 = pneg %p157
        %p383 = pneg %p188
        %p384 = pneg %p185
        %s385 = sand.u32 %s175, 1
        %s386 = scalar_lea.sflag [#allocation6], %s385
        %s387 = sand.u32 %s175, 1
        %s388 = smul.addr %s387, 8
        %s389 = scalar_lea.vmem [#allocation12], %s388
        %p390 = pneg %p216
        %p391 = pneg %p213
        %s392 = sand.u32 %s203, 1
        %s393 = scalar_lea.sflag [#allocation14], %s392
        %s394 = sand.u32 %s203, 1
        %s395 = smul.addr %s394, 8
        %s396 = scalar_lea.vmem [#allocation13], %s395
        %p397 = scmp.eq.s32.totalorder %s36, 0
        // Predicated region
        $region57: #{tpu_custom_call.1} parent=39 // pred_check
          %p398 = pneg %p397
        $region58: #{tpu_custom_call.1} parent=39 // pred_check_branch
          %400 = sbr.rel (%p398) target = $region60
        $region59: #{tpu_custom_call.1} parent=39 // pred_region
          %v401 = vld [vmem:[#allocation10] sm:$0xf]
          %v402 = vld [vmem:[#allocation10 + $0x4] sm:$0xf]
          %v403 = vld [vmem:[#allocation10 + $0x8] sm:$0xf]
          %v404 = vld [vmem:[#allocation10 + $0xc] sm:$0xf]
          %v405 = vld [vmem:[#allocation10 + $0x10] sm:$0xf]
          %v406 = vld [vmem:[#allocation10 + $0x14] sm:$0xf]
          %v407 = vld [vmem:[#allocation10 + $0x18] sm:$0xf]
          %v408 = vld [vmem:[#allocation10 + $0x1c] sm:$0xf]
          %v409 = vld [vmem:[#allocation10 + $0x20] sm:$0xf]
          %v410 = vld [vmem:[#allocation10 + $0x24] sm:$0xf]
          %v411 = vld [vmem:[#allocation10 + $0x28] sm:$0xf]
          %v412 = vld [vmem:[#allocation10 + $0x2c] sm:$0xf]
          %v413 = vld [vmem:[#allocation10 + $0x30] sm:$0xf]
          %v414 = vld [vmem:[#allocation10 + $0x34] sm:$0xf]
          %v415 = vld [vmem:[#allocation10 + $0x38] sm:$0xf]
          %v416 = vld [vmem:[#allocation10 + $0x3c] sm:$0xf]
          %v417 = vld [vmem:[%s4] sm:$0x1]
          %v418 = vld [vmem:[%s337] sm:$0xf]
          %v419 = vld [vmem:[%s337 + $0x4] sm:$0xf]
          %v420 = vld [vmem:[%s337 + $0x8] sm:$0xf]
          %v421 = vld [vmem:[%s337 + $0xc] sm:$0xf]
          %v422 = vld [vmem:[%s337 + $0x10] sm:$0xf]
          %v423 = vld [vmem:[%s337 + $0x14] sm:$0xf]
          %v424 = vld [vmem:[%s337 + $0x18] sm:$0xf]
          %v425 = vld [vmem:[%s337 + $0x1c] sm:$0xf]
          %v426 = vld [vmem:[%s337 + $0x20] sm:$0xf]
          %v427 = vld [vmem:[%s337 + $0x24] sm:$0xf]
          %v428 = vld [vmem:[%s337 + $0x28] sm:$0xf]
          %v429 = vld [vmem:[%s337 + $0x2c] sm:$0xf]
          %v430 = vld [vmem:[%s337 + $0x30] sm:$0xf]
          %v431 = vld [vmem:[%s337 + $0x34] sm:$0xf]
          %v432 = vld [vmem:[%s337 + $0x38] sm:$0xf]
          %v433 = vld [vmem:[%s337 + $0x3c] sm:$0xf]
          %v435 = vperm.slane %v417, 0
          %v453 = vunpack.c.l.b16 %v418
          %v454 = vunpack.c.l.b16 %v419
          %v455 = vunpack.c.l.b16 %v420
          %v456 = vunpack.c.l.b16 %v421
          %v457 = vunpack.c.l.b16 %v422
          %v458 = vunpack.c.l.b16 %v423
          %v459 = vunpack.c.l.b16 %v424
          %v460 = vunpack.c.l.b16 %v425
          %v461 = vunpack.c.l.b16 %v426
          %v462 = vunpack.c.l.b16 %v427
          %v463 = vunpack.c.l.b16 %v428
          %v464 = vunpack.c.l.b16 %v429
          %v465 = vunpack.c.l.b16 %v430
          %v466 = vunpack.c.l.b16 %v431
          %v467 = vunpack.c.l.b16 %v432
          %v468 = vunpack.c.l.b16 %v433
          %v469 = vpack.c.b16 %v454, %v453
          %v470 = vpack.c.b16 %v456, %v455
          %v471 = vpack.c.b16 %v458, %v457
          %v472 = vpack.c.b16 %v460, %v459
          %v473 = vpack.c.b16 %v462, %v461
          %v474 = vpack.c.b16 %v464, %v463
          %v475 = vpack.c.b16 %v466, %v465
          %v476 = vpack.c.b16 %v468, %v467
          %v501 = vunpack.c.l.b16 %v401
          %v502 = vunpack.c.l.b16 %v402
          %v503 = vunpack.c.l.b16 %v403
          %v504 = vunpack.c.l.b16 %v404
          %v505 = vunpack.c.l.b16 %v405
          %v506 = vunpack.c.l.b16 %v406
          %v507 = vunpack.c.l.b16 %v407
          %v508 = vunpack.c.l.b16 %v408
          %v509 = vunpack.c.l.b16 %v409
          %v510 = vunpack.c.l.b16 %v410
          %v511 = vunpack.c.l.b16 %v411
          %v512 = vunpack.c.l.b16 %v412
          %v513 = vunpack.c.l.b16 %v413
          %v514 = vunpack.c.l.b16 %v414
          %v515 = vunpack.c.l.b16 %v415
          %v516 = vunpack.c.l.b16 %v416
          %v517 = vpack.c.b16 %v502, %v501
          %v518 = vpack.c.b16 %v504, %v503
          %v519 = vpack.c.b16 %v506, %v505
          %v520 = vpack.c.b16 %v508, %v507
          %v521 = vpack.c.b16 %v510, %v509
          %v522 = vpack.c.b16 %v512, %v511
          %v523 = vpack.c.b16 %v514, %v513
          %v524 = vpack.c.b16 %v516, %v515
          %533 = vmatpush.bf16.msra.mxu0 %v524
          %534 = vmatpush.bf16.msra.mxu0 %v523
          %535 = vmatpush.bf16.msra.mxu0 %v522
          %536 = vmatpush.bf16.msra.mxu0 %v521
          %537 = vmatpush.bf16.msra.mxu0 %v520
          %538 = vmatpush.bf16.msra.mxu0 %v519
          %539 = vmatpush.bf16.msra.mxu0 %v518
          %540 = vmatpush.bf16.msra.mxu0 %v517
          %541 = vmatmul.bf16.gmra.mxu0 %v469
          %v542 = vpop.f32.mrf.mxu0
          %v543 = vadd.f32 %v435, %v542
          %v544 = vpop.f32.mrf.mxu0
          %v545 = vadd.f32 %v435, %v544
          %546 = vmatmul.bf16.gmra.mxu0 %v470
          %v547 = vpop.f32.mrf.mxu0
          %v548 = vadd.f32 %v435, %v547
          %v549 = vpop.f32.mrf.mxu0
          %v550 = vadd.f32 %v435, %v549
          %551 = vmatmul.bf16.gmra.mxu0 %v471
          %v552 = vpop.f32.mrf.mxu0
          %v553 = vadd.f32 %v435, %v552
          %v554 = vpop.f32.mrf.mxu0
          %v555 = vadd.f32 %v435, %v554
          %556 = vmatmul.bf16.gmra.mxu0 %v472
          %v557 = vpop.f32.mrf.mxu0
          %v558 = vadd.f32 %v435, %v557
          %v559 = vpop.f32.mrf.mxu0
          %v560 = vadd.f32 %v435, %v559
          %561 = vmatmul.bf16.gmra.mxu0 %v473
          %v562 = vpop.f32.mrf.mxu0
          %v563 = vadd.f32 %v435, %v562
          %v564 = vpop.f32.mrf.mxu0
          %v565 = vadd.f32 %v435, %v564
          %566 = vmatmul.bf16.gmra.mxu0 %v474
          %v567 = vpop.f32.mrf.mxu0
          %v568 = vadd.f32 %v435, %v567
          %v569 = vpop.f32.mrf.mxu0
          %v570 = vadd.f32 %v435, %v569
          %571 = vmatmul.bf16.gmra.mxu0 %v475
          %v572 = vpop.f32.mrf.mxu0
          %v573 = vadd.f32 %v435, %v572
          %v574 = vpop.f32.mrf.mxu0
          %v575 = vadd.f32 %v435, %v574
          %576 = vmatmul.bf16.gmra.mxu0 %v476
          %v577 = vpop.f32.mrf.mxu0
          %v578 = vadd.f32 %v435, %v577
          %v579 = vpop.f32.mrf.mxu0
          %v580 = vadd.f32 %v435, %v579
          %581 = vdwg.mxu0
          %v582 = vld [vmem:[%s347] sm:$0xf]
          %v583 = vld [vmem:[%s347 + $0x4] sm:$0xf]
          %v584 = vld [vmem:[%s347 + $0x8] sm:$0xf]
          %v585 = vld [vmem:[%s347 + $0xc] sm:$0xf]
          %v586 = vld [vmem:[%s347 + $0x10] sm:$0xf]
          %v587 = vld [vmem:[%s347 + $0x14] sm:$0xf]
          %v588 = vld [vmem:[%s347 + $0x18] sm:$0xf]
          %v589 = vld [vmem:[%s347 + $0x1c] sm:$0xf]
          %v590 = vld [vmem:[%s347 + $0x20] sm:$0xf]
          %v591 = vld [vmem:[%s347 + $0x24] sm:$0xf]
          %v592 = vld [vmem:[%s347 + $0x28] sm:$0xf]
          %v593 = vld [vmem:[%s347 + $0x2c] sm:$0xf]
          %v594 = vld [vmem:[%s347 + $0x30] sm:$0xf]
          %v595 = vld [vmem:[%s347 + $0x34] sm:$0xf]
          %v596 = vld [vmem:[%s347 + $0x38] sm:$0xf]
          %v597 = vld [vmem:[%s347 + $0x3c] sm:$0xf]
          %v614 = vunpack.c.l.b16 %v582
          %v615 = vunpack.c.l.b16 %v583
          %v616 = vunpack.c.l.b16 %v584
          %v617 = vunpack.c.l.b16 %v585
          %v618 = vunpack.c.l.b16 %v586
          %v619 = vunpack.c.l.b16 %v587
          %v620 = vunpack.c.l.b16 %v588
          %v621 = vunpack.c.l.b16 %v589
          %v622 = vunpack.c.l.b16 %v590
          %v623 = vunpack.c.l.b16 %v591
          %v624 = vunpack.c.l.b16 %v592
          %v625 = vunpack.c.l.b16 %v593
          %v626 = vunpack.c.l.b16 %v594
          %v627 = vunpack.c.l.b16 %v595
          %v628 = vunpack.c.l.b16 %v596
          %v629 = vunpack.c.l.b16 %v597
          %v630 = vpack.c.b16 %v615, %v614
          %v631 = vpack.c.b16 %v617, %v616
          %v632 = vpack.c.b16 %v619, %v618
          %v633 = vpack.c.b16 %v621, %v620
          %v634 = vpack.c.b16 %v623, %v622
          %v635 = vpack.c.b16 %v625, %v624
          %v636 = vpack.c.b16 %v627, %v626
          %v637 = vpack.c.b16 %v629, %v628
          %646 = vmatpush.bf16.msra.mxu0 %v524
          %647 = vmatpush.bf16.msra.mxu0 %v523
          %648 = vmatpush.bf16.msra.mxu0 %v522
          %649 = vmatpush.bf16.msra.mxu0 %v521
          %650 = vmatpush.bf16.msra.mxu0 %v520
          %651 = vmatpush.bf16.msra.mxu0 %v519
          %652 = vmatpush.bf16.msra.mxu0 %v518
          %653 = vmatpush.bf16.msra.mxu0 %v517
          %654 = vmatmul.bf16.gmra.mxu0 %v630
          %v655 = vpop.f32.mrf.mxu0
          %v656 = vadd.f32 %v435, %v655
          %v657 = vpop.f32.mrf.mxu0
          %v658 = vadd.f32 %v435, %v657
          %659 = vmatmul.bf16.gmra.mxu0 %v631
          %v660 = vpop.f32.mrf.mxu0
          %v661 = vadd.f32 %v435, %v660
          %v662 = vpop.f32.mrf.mxu0
          %v663 = vadd.f32 %v435, %v662
          %664 = vmatmul.bf16.gmra.mxu0 %v632
          %v665 = vpop.f32.mrf.mxu0
          %v666 = vadd.f32 %v435, %v665
          %v667 = vpop.f32.mrf.mxu0
          %v668 = vadd.f32 %v435, %v667
          %669 = vmatmul.bf16.gmra.mxu0 %v633
          %v670 = vpop.f32.mrf.mxu0
          %v671 = vadd.f32 %v435, %v670
          %v672 = vpop.f32.mrf.mxu0
          %v673 = vadd.f32 %v435, %v672
          %674 = vmatmul.bf16.gmra.mxu0 %v634
          %v675 = vpop.f32.mrf.mxu0
          %v676 = vadd.f32 %v435, %v675
          %v677 = vpop.f32.mrf.mxu0
          %v678 = vadd.f32 %v435, %v677
          %679 = vmatmul.bf16.gmra.mxu0 %v635
          %v680 = vpop.f32.mrf.mxu0
          %v681 = vadd.f32 %v435, %v680
          %v682 = vpop.f32.mrf.mxu0
          %v683 = vadd.f32 %v435, %v682
          %684 = vmatmul.bf16.gmra.mxu0 %v636
          %v685 = vpop.f32.mrf.mxu0
          %v686 = vadd.f32 %v435, %v685
          %v687 = vpop.f32.mrf.mxu0
          %v688 = vadd.f32 %v435, %v687
          %689 = vmatmul.bf16.gmra.mxu0 %v637
          %v690 = vpop.f32.mrf.mxu0
          %v691 = vadd.f32 %v435, %v690
          %v692 = vpop.f32.mrf.mxu0
          %v693 = vadd.f32 %v435, %v692
          %694 = vdwg.mxu0
          %v695 = vpack.c.bf16 %v543, %v543
          %v696 = vpack.c.bf16 %v545, %v545
          %v697 = vpack.c.bf16 %v548, %v548
          %v698 = vpack.c.bf16 %v550, %v550
          %v699 = vpack.c.bf16 %v553, %v553
          %v700 = vpack.c.bf16 %v555, %v555
          %v701 = vpack.c.bf16 %v558, %v558
          %v702 = vpack.c.bf16 %v560, %v560
          %v703 = vpack.c.bf16 %v563, %v563
          %v704 = vpack.c.bf16 %v565, %v565
          %v705 = vpack.c.bf16 %v568, %v568
          %v706 = vpack.c.bf16 %v570, %v570
          %v707 = vpack.c.bf16 %v573, %v573
          %v708 = vpack.c.bf16 %v575, %v575
          %v709 = vpack.c.bf16 %v578, %v578
          %v710 = vpack.c.bf16 %v580, %v580
          %711 = vst [vmem:[#allocation2] sm:$0xf] %v695
          %712 = vst [vmem:[#allocation2 + $0x4] sm:$0xf] %v696
          %713 = vst [vmem:[#allocation2 + $0x8] sm:$0xf] %v697
          %714 = vst [vmem:[#allocation2 + $0xc] sm:$0xf] %v698
          %715 = vst [vmem:[#allocation2 + $0x10] sm:$0xf] %v699
          %716 = vst [vmem:[#allocation2 + $0x14] sm:$0xf] %v700
          %717 = vst [vmem:[#allocation2 + $0x18] sm:$0xf] %v701
          %718 = vst [vmem:[#allocation2 + $0x1c] sm:$0xf] %v702
          %719 = vst [vmem:[#allocation2 + $0x20] sm:$0xf] %v703
          %720 = vst [vmem:[#allocation2 + $0x24] sm:$0xf] %v704
          %721 = vst [vmem:[#allocation2 + $0x28] sm:$0xf] %v705
          %722 = vst [vmem:[#allocation2 + $0x2c] sm:$0xf] %v706
          %723 = vst [vmem:[#allocation2 + $0x30] sm:$0xf] %v707
          %724 = vst [vmem:[#allocation2 + $0x34] sm:$0xf] %v708
          %725 = vst [vmem:[#allocation2 + $0x38] sm:$0xf] %v709
          %726 = vst [vmem:[#allocation2 + $0x3c] sm:$0xf] %v710
          %v727 = vpack.c.bf16 %v656, %v656
          %v728 = vpack.c.bf16 %v658, %v658
          %v729 = vpack.c.bf16 %v661, %v661
          %v730 = vpack.c.bf16 %v663, %v663
          %v731 = vpack.c.bf16 %v666, %v666
          %v732 = vpack.c.bf16 %v668, %v668
          %v733 = vpack.c.bf16 %v671, %v671
          %v734 = vpack.c.bf16 %v673, %v673
          %v735 = vpack.c.bf16 %v676, %v676
          %v736 = vpack.c.bf16 %v678, %v678
          %v737 = vpack.c.bf16 %v681, %v681
          %v738 = vpack.c.bf16 %v683, %v683
          %v739 = vpack.c.bf16 %v686, %v686
          %v740 = vpack.c.bf16 %v688, %v688
          %v741 = vpack.c.bf16 %v691, %v691
          %v742 = vpack.c.bf16 %v693, %v693
          %743 = vst [vmem:[#allocation3] sm:$0xf] %v727
          %744 = vst [vmem:[#allocation3 + $0x4] sm:$0xf] %v728
          %745 = vst [vmem:[#allocation3 + $0x8] sm:$0xf] %v729
          %746 = vst [vmem:[#allocation3 + $0xc] sm:$0xf] %v730
          %747 = vst [vmem:[#allocation3 + $0x10] sm:$0xf] %v731
          %748 = vst [vmem:[#allocation3 + $0x14] sm:$0xf] %v732
          %749 = vst [vmem:[#allocation3 + $0x18] sm:$0xf] %v733
          %750 = vst [vmem:[#allocation3 + $0x1c] sm:$0xf] %v734
          %751 = vst [vmem:[#allocation3 + $0x20] sm:$0xf] %v735
          %752 = vst [vmem:[#allocation3 + $0x24] sm:$0xf] %v736
          %753 = vst [vmem:[#allocation3 + $0x28] sm:$0xf] %v737
          %754 = vst [vmem:[#allocation3 + $0x2c] sm:$0xf] %v738
          %755 = vst [vmem:[#allocation3 + $0x30] sm:$0xf] %v739
          %756 = vst [vmem:[#allocation3 + $0x34] sm:$0xf] %v740
          %757 = vst [vmem:[#allocation3 + $0x38] sm:$0xf] %v741
          %758 = vst [vmem:[#allocation3 + $0x3c] sm:$0xf] %v742
        $region60: #{tpu_custom_call.1} parent=39 // pred_fallthru
          _
        %v759 = vld [vmem:[%s327] sm:$0xf]
        %v760 = vld [vmem:[#allocation10] sm:$0xf]
        %v761 = vld [vmem:[#allocation10 + $0x4] sm:$0xf]
        %v762 = vld [vmem:[#allocation10 + $0x8] sm:$0xf]
        %v763 = vld [vmem:[#allocation10 + $0xc] sm:$0xf]
        %v764 = vld [vmem:[#allocation10 + $0x10] sm:$0xf]
        %v765 = vld [vmem:[#allocation10 + $0x14] sm:$0xf]
        %v766 = vld [vmem:[#allocation10 + $0x18] sm:$0xf]
        %v767 = vld [vmem:[#allocation10 + $0x1c] sm:$0xf]
        %v768 = vld [vmem:[#allocation10 + $0x20] sm:$0xf]
        %v769 = vld [vmem:[#allocation10 + $0x24] sm:$0xf]
        %v770 = vld [vmem:[#allocation10 + $0x28] sm:$0xf]
        %v771 = vld [vmem:[#allocation10 + $0x2c] sm:$0xf]
        %v772 = vld [vmem:[#allocation10 + $0x30] sm:$0xf]
        %v773 = vld [vmem:[#allocation10 + $0x34] sm:$0xf]
        %v774 = vld [vmem:[#allocation10 + $0x38] sm:$0xf]
        %v775 = vld [vmem:[#allocation10 + $0x3c] sm:$0xf]
        %v776 = vld [vmem:[%s4] sm:$0x1]
        %v778 = vperm.slane %v776, 0
        %v796 = vunpack.c.l.b16 %v760
        %v797 = vunpack.c.l.b16 %v761
        %v798 = vunpack.c.l.b16 %v762
        %v799 = vunpack.c.l.b16 %v763
        %v800 = vunpack.c.l.b16 %v764
        %v801 = vunpack.c.l.b16 %v765
        %v802 = vunpack.c.l.b16 %v766
        %v803 = vunpack.c.l.b16 %v767
        %v804 = vunpack.c.l.b16 %v768
        %v805 = vunpack.c.l.b16 %v769
        %v806 = vunpack.c.l.b16 %v770
        %v807 = vunpack.c.l.b16 %v771
        %v808 = vunpack.c.l.b16 %v772
        %v809 = vunpack.c.l.b16 %v773
        %v810 = vunpack.c.l.b16 %v774
        %v811 = vunpack.c.l.b16 %v775
        %v812 = vpack.c.b16 %v797, %v796
        %v813 = vpack.c.b16 %v799, %v798
        %v814 = vpack.c.b16 %v801, %v800
        %v815 = vpack.c.b16 %v803, %v802
        %v816 = vpack.c.b16 %v805, %v804
        %v817 = vpack.c.b16 %v807, %v806
        %v818 = vpack.c.b16 %v809, %v808
        %v819 = vpack.c.b16 %v811, %v810
        %828 = vmatpush.bf16.msra.mxu0 %v819
        %829 = vmatpush.bf16.msra.mxu0 %v818
        %830 = vmatpush.bf16.msra.mxu0 %v817
        %831 = vmatpush.bf16.msra.mxu0 %v816
        %832 = vmatpush.bf16.msra.mxu0 %v815
        %833 = vmatpush.bf16.msra.mxu0 %v814
        %834 = vmatpush.bf16.msra.mxu0 %v813
        %835 = vmatpush.bf16.msra.mxu0 %v812
        %836 = vmatmul.bf16.gmra.mxu0 %v759
        %v837 = vpop.f32.mrf.mxu0
        %v838 = vadd.f32 %v778, %v837
        %v839 = vpop.f32.mrf.mxu0
        %840 = vdwg.mxu0
        %v841 = vpack.c.bf16 %v838, %v838
        %v842 = vld [vmem:[#allocation2] sm:$0xf]
        %v843 = vld [vmem:[#allocation2 + $0x4] sm:$0xf]
        %v844 = vld [vmem:[#allocation2 + $0x8] sm:$0xf]
        %v845 = vld [vmem:[#allocation2 + $0xc] sm:$0xf]
        %v846 = vld [vmem:[#allocation2 + $0x10] sm:$0xf]
        %v847 = vld [vmem:[#allocation2 + $0x14] sm:$0xf]
        %v848 = vld [vmem:[#allocation2 + $0x18] sm:$0xf]
        %v849 = vld [vmem:[#allocation2 + $0x1c] sm:$0xf]
        %v850 = vld [vmem:[#allocation2 + $0x20] sm:$0xf]
        %v851 = vld [vmem:[#allocation2 + $0x24] sm:$0xf]
        %v852 = vld [vmem:[#allocation2 + $0x28] sm:$0xf]
        %v853 = vld [vmem:[#allocation2 + $0x2c] sm:$0xf]
        %v854 = vld [vmem:[#allocation2 + $0x30] sm:$0xf]
        %v855 = vld [vmem:[#allocation2 + $0x34] sm:$0xf]
        %v856 = vld [vmem:[#allocation2 + $0x38] sm:$0xf]
        %v857 = vld [vmem:[#allocation2 + $0x3c] sm:$0xf]
        %v874 = vunpack.c.l.b16 %v842
        %v875 = vunpack.c.l.b16 %v843
        %v876 = vunpack.c.l.b16 %v844
        %v877 = vunpack.c.l.b16 %v845
        %v878 = vunpack.c.l.b16 %v846
        %v879 = vunpack.c.l.b16 %v847
        %v880 = vunpack.c.l.b16 %v848
        %v881 = vunpack.c.l.b16 %v849
        %v882 = vunpack.c.l.b16 %v850
        %v883 = vunpack.c.l.b16 %v851
        %v884 = vunpack.c.l.b16 %v852
        %v885 = vunpack.c.l.b16 %v853
        %v886 = vunpack.c.l.b16 %v854
        %v887 = vunpack.c.l.b16 %v855
        %v888 = vunpack.c.l.b16 %v856
        %v889 = vunpack.c.l.b16 %v857
        %v890 = vpack.c.b16 %v875, %v874
        %v891 = vpack.c.b16 %v877, %v876
        %v892 = vpack.c.b16 %v879, %v878
        %v893 = vpack.c.b16 %v881, %v880
        %v894 = vpack.c.b16 %v883, %v882
        %v895 = vpack.c.b16 %v885, %v884
        %v896 = vpack.c.b16 %v887, %v886
        %v897 = vpack.c.b16 %v889, %v888
        %906 = vmatpush.bf16.xpose.msra.mxu0 %v897
        %907 = vmatpush.bf16.xpose.msra.mxu0 %v896
        %908 = vmatpush.bf16.xpose.msra.mxu0 %v895
        %909 = vmatpush.bf16.xpose.msra.mxu0 %v894
        %910 = vmatpush.bf16.xpose.msra.mxu0 %v893
        %911 = vmatpush.bf16.xpose.msra.mxu0 %v892
        %912 = vmatpush.bf16.xpose.msra.mxu0 %v891
        %913 = vmatpush.bf16.xpose.msra.mxu0 %v890
        %914 = vmatmul.bf16.gmra.mxu0 %v841
        %v915 = vpop.f32.mrf.mxu0
        %v916 = vadd.f32 0.0, %v915
        %v917 = vpop.f32.mrf.mxu0
        %918 = vdwg.mxu0
        %v919 = vlaneseq
        %v920 = vand.u32 %v919, 127
        %vm921 = vcmp.lt.s32.totalorder %v920, 8
        %v922 = vsel %vm921, %v916, -inf
        %923 = vmax.xlane.f32.xlu0 %v922
        %v924 = vpop.xlane.xlu0 %923
        %v925 = vsub.f32 %v922, %v924
        %v926 = vmul.f32 %v925, 1.442695
        %v927 = vpow.pop %v926
        %928 = vadd.xlane.f32.xlu0 %v927
        %v929 = vpop.xlane.xlu0 %928
        %v930 = vrcp.pop %v929
        %v931 = vmul.f32 %v927, %v930
        %v932 = vpack.c.bf16 %v931, %v931
        %v933 = vld [vmem:[#allocation3] sm:$0xf]
        %v934 = vld [vmem:[#allocation3 + $0x4] sm:$0xf]
        %v935 = vld [vmem:[#allocation3 + $0x8] sm:$0xf]
        %v936 = vld [vmem:[#allocation3 + $0xc] sm:$0xf]
        %v937 = vld [vmem:[#allocation3 + $0x10] sm:$0xf]
        %v938 = vld [vmem:[#allocation3 + $0x14] sm:$0xf]
        %v939 = vld [vmem:[#allocation3 + $0x18] sm:$0xf]
        %v940 = vld [vmem:[#allocation3 + $0x1c] sm:$0xf]
        %v941 = vld [vmem:[#allocation3 + $0x20] sm:$0xf]
        %v942 = vld [vmem:[#allocation3 + $0x24] sm:$0xf]
        %v943 = vld [vmem:[#allocation3 + $0x28] sm:$0xf]
        %v944 = vld [vmem:[#allocation3 + $0x2c] sm:$0xf]
        %v945 = vld [vmem:[#allocation3 + $0x30] sm:$0xf]
        %v946 = vld [vmem:[#allocation3 + $0x34] sm:$0xf]
        %v947 = vld [vmem:[#allocation3 + $0x38] sm:$0xf]
        %v948 = vld [vmem:[#allocation3 + $0x3c] sm:$0xf]
        %v965 = vunpack.c.l.b16 %v933
        %v966 = vunpack.c.l.b16 %v934
        %v967 = vunpack.c.l.b16 %v935
        %v968 = vunpack.c.l.b16 %v936
        %v969 = vunpack.c.l.b16 %v937
        %v970 = vunpack.c.l.b16 %v938
        %v971 = vunpack.c.l.b16 %v939
        %v972 = vunpack.c.l.b16 %v940
        %v973 = vunpack.c.l.b16 %v941
        %v974 = vunpack.c.l.b16 %v942
        %v975 = vunpack.c.l.b16 %v943
        %v976 = vunpack.c.l.b16 %v944
        %v977 = vunpack.c.l.b16 %v945
        %v978 = vunpack.c.l.b16 %v946
        %v979 = vunpack.c.l.b16 %v947
        %v980 = vunpack.c.l.b16 %v948
        %v981 = vpack.c.b16 %v966, %v965
        %v982 = vpack.c.b16 %v968, %v967
        %v983 = vpack.c.b16 %v970, %v969
        %v984 = vpack.c.b16 %v972, %v971
        %v985 = vpack.c.b16 %v974, %v973
        %v986 = vpack.c.b16 %v976, %v975
        %v987 = vpack.c.b16 %v978, %v977
        %v988 = vpack.c.b16 %v980, %v979
        %997 = vmatpush.bf16.msra.mxu0 %v988
        %998 = vmatpush.bf16.msra.mxu0 %v987
        %999 = vmatpush.bf16.msra.mxu0 %v986
        %1000 = vmatpush.bf16.msra.mxu0 %v985
        %1001 = vmatpush.bf16.msra.mxu0 %v984
        %1002 = vmatpush.bf16.msra.mxu0 %v983
        %1003 = vmatpush.bf16.msra.mxu0 %v982
        %1004 = vmatpush.bf16.msra.mxu0 %v981
        %1005 = vmatmul.bf16.gmra.mxu0 %v932
        %v1006 = vpop.f32.mrf.mxu0
        %v1007 = vadd.f32 0.0, %v1006
        %v1008 = vpop.f32.mrf.mxu0
        %1009 = vdwg.mxu0
        %1010 = vst [vmem:[%s389] sm:$0xff] %v1007
        %1011 = vst [vmem:[%s396] sm:$0xff] %v931
        %s1012 = sand.u32 %s175, 1
        %s1013 = scalar_lea.sflag [#allocation6], %s1012
        %s1014 = sand.u32 %s175, 1
        %s1015 = smul.addr %s1014, 8
        %s1016 = scalar_lea.vmem [#allocation12], %s1015
        %s1017 = sand.u32 %s203, 1
        %s1018 = scalar_lea.sflag [#allocation14], %s1017
        %s1019 = sand.u32 %s203, 1
        %s1020 = smul.addr %s1019, 8
        %s1021 = scalar_lea.vmem [#allocation13], %s1020
        // Predicated region
        $region61: #{tpu_custom_call.1} parent=39 // pred_check
          %p1022 = pneg %p185
        $region62: #{tpu_custom_call.1} parent=39 // pred_check_branch
          %1024 = sbr.rel (%p1022) target = $region64
        $region63: #{tpu_custom_call.1} parent=39 // pred_region
          %1026 = vsyncadd %s1013, 0
          %s1027 = sadd.s32 %s36, %s35
          %s1028 = smul.addr %s1027, 8
          %s1029 = scalar_lea.hbm %s5, %s1028
          %s1031 = sshll.u32 %s1016, 4
          %s1032 = int_to_ptr.vmem [resolvable:$true] %s1031
          %s1033 = sshll.u32 %s1029, 4
          %s1034 = int_to_ptr.hbm [resolvable:$true] %s1033
          %1036 = dma.vmem_to_hbm [thread:$0]  %s1032, 128, %s1034, %s1013
        $region64: #{tpu_custom_call.1} parent=39 // pred_fallthru
          _
        // Predicated region
        $region65: #{tpu_custom_call.1} parent=39 // pred_check
          %p1037 = pneg %p213
        $region66: #{tpu_custom_call.1} parent=39 // pred_check_branch
          %1039 = sbr.rel (%p1037) target = $region68
        $region67: #{tpu_custom_call.1} parent=39 // pred_region
          %1041 = vsyncadd %s1018, 0
          %s1042 = sadd.s32 %s36, %s35
          %s1043 = smul.addr %s1042, 8
          %s1044 = scalar_lea.hbm %s6, %s1043
          %s1046 = sshll.u32 %s1021, 4
          %s1047 = int_to_ptr.vmem [resolvable:$true] %s1046
          %s1048 = sshll.u32 %s1044, 4
          %s1049 = int_to_ptr.hbm [resolvable:$true] %s1048
          %1051 = dma.vmem_to_hbm [thread:$0]  %s1047, 128, %s1049, %s1018
        $region68: #{tpu_custom_call.1} parent=39 // pred_fallthru
          _
      $region40: #{tpu_custom_call.1} parent=5 // pred_fallthru
        _
      %p1052 = scmp.le.s32.totalorder 2, %s26
      // Predicated region
      $region69: #{tpu_custom_call.1} parent=5 // pred_check
        %p1053 = pneg %p1052
      $region70: #{tpu_custom_call.1} parent=5 // pred_check_branch
        %1055 = sbr.rel (%p1053) target = $region72
      $region71: #{tpu_custom_call.1} parent=5 // pred_region
        %s1056 = ssub.s32 %s26, 2
        // Predicated region
        $region73: #{tpu_custom_call.1} parent=71 // pred_check
          %p1057 = pneg %p191
        $region74: #{tpu_custom_call.1} parent=71 // pred_check_branch
          %1059 = sbr.rel (%p1057) target = $region76
        $region75: #{tpu_custom_call.1} parent=71 // pred_region
          %s1060 = sand.u32 %s176, 1
          %s1061 = scalar_lea.sflag [#allocation6], %s1060
          %s1062 = sand.u32 %s176, 1
          %s1063 = smul.addr %s1062, 8
          %s1064 = scalar_lea.vmem [#allocation12], %s1063
          %1066 = dma.done %s1061, 128
        $region76: #{tpu_custom_call.1} parent=71 // pred_fallthru
          _
        // Predicated region
        $region77: #{tpu_custom_call.1} parent=71 // pred_check
          %p1067 = pneg %p219
        $region78: #{tpu_custom_call.1} parent=71 // pred_check_branch
          %1069 = sbr.rel (%p1067) target = $region80
        $region79: #{tpu_custom_call.1} parent=71 // pred_region
          %s1070 = sand.u32 %s204, 1
          %s1071 = scalar_lea.sflag [#allocation14], %s1070
          %s1072 = sand.u32 %s204, 1
          %s1073 = smul.addr %s1072, 8
          %s1074 = scalar_lea.vmem [#allocation13], %s1073
          %1076 = dma.done %s1071, 128
        $region80: #{tpu_custom_call.1} parent=71 // pred_fallthru
          _
      $region72: #{tpu_custom_call.1} parent=5 // pred_fallthru
        _
    $region6: #{tpu_custom_call.1} parent=1 // loop_footer
      %s30 = sadd.s32 1, %s26
    $region7: #{tpu_custom_call.1} parent=1 // loop_footer_branch
      %25 = sbr.rel target = $region3
    $region8: #{tpu_custom_call.1} parent=1 // loop_exit
      _
    %1077 = vsyncpa [#allocation5], 1
    %s1078 = scalar_lea.sflag [#allocation5], 1
    %1079 = vsyncpa %s1078, 1
    %1080 = vsyncpa [#allocation8], 1
    %s1081 = scalar_lea.sflag [#allocation8], 1
    %1082 = vsyncpa %s1081, 1
    %1083 = vsyncpa [#allocation11], 1
    %1084 = vsyncpa [#allocation6], 1
    %s1085 = scalar_lea.sflag [#allocation6], 1
    %1086 = vsyncpa %s1085, 1
    %1087 = vsyncpa [#allocation14], 1
    %s1088 = scalar_lea.sflag [#allocation14], 1
    %1089 = vsyncpa %s1088, 1

</llo_original>
